<compile_context>
chip_gen: v7x
topology: tpu7x:2x2x1
jax: 0.10.0
libtpu: 0.0.40
codegen_flags: <defaults>
</compile_context>

<pallas_src>
import functools
import math

import jax
import jax.numpy as jnp
import numpy as np
from jax.experimental import pallas as pl
from jax.experimental.pallas import tpu as pltpu

_BN_EPS = 1e-5
_LANE = 128
_TARGET_LANES = 1024            # aim for >= this many output lanes per grid step


def _round_up(x, m):
    return ((x + m - 1) // m) * m


# ---------------------------------------------------------------------------
# In-kernel math helpers
# ---------------------------------------------------------------------------
def _erf_approx(x):
    # Abramowitz & Stegun 7.1.26; approx reciprocal runs on the EUP slot.
    # abs error ~1e-4 with approx=True (well inside the test tolerance).
    a1, a2, a3, a4, a5 = (0.254829592, -0.284496736, 1.421413741,
                          -1.453152027, 1.061405429)
    p = 0.3275911
    sign = jnp.where(x >= 0.0, 1.0, -1.0)
    ax = jnp.abs(x)
    t = pl.reciprocal(1.0 + p * ax, approx=True)
    poly = ((((a5 * t + a4) * t + a3) * t + a2) * t + a1) * t
    return sign * (1.0 - poly * jnp.exp(-ax * ax))


def _gelu_exact(x):
    # F.gelu default (approximate="none"): 0.5 * x * (1 + erf(x / sqrt(2)))
    return 0.5 * x * (1.0 + _erf_approx(x * (1.0 / math.sqrt(2.0))))


# ---------------------------------------------------------------------------
# Fused kernel: conv (one stacked-K matmul) + batch stats + BN fold + GELU
# ---------------------------------------------------------------------------
def _fused_kernel(x_ref, w_ref, gb_ref, mask_ref, out_ref,
                  slab_ref, y_ref, sum_ref, ssq_ref, *,
                  taps, hw_c, nb, cin, n_imgs, m_valid, nblocks):
    b = pl.program_id(0)

    @pl.when(b == 0)
    def _init():
        sum_ref[...] = jnp.zeros_like(sum_ref)
        ssq_ref[...] = jnp.zeros_like(ssq_ref)
        # zero once so the K-padding rows (never rewritten) stay exactly 0
        slab_ref[...] = jnp.zeros_like(slab_ref)

    # ---- build the stacked RHS slab: row = tap*Cin + c, lane = (img, pixel)
    # The T lane-shifted copies are paid once here and reused by one matmul.
    for i in range(nb):
        for t, off in enumerate(taps):
            slab_ref[t * cin:(t + 1) * cin, i * hw_c:(i + 1) * hw_c] = (
                x_ref[i, :, off:off + hw_c].astype(slab_ref.dtype))

    # ---- ONE MXU matmul, K = T*Cin (padded), f32 accumulation --------------
    y = jnp.dot(w_ref[...], slab_ref[...],
                preferred_element_type=jnp.float32)          # (Cout, nb*hw_c)

    # ---- batch statistics over valid output positions ----------------------
    ym = y * mask_ref[...]                                   # mask invalid cols
    sum_ref[...] += jnp.sum(ym, axis=1, keepdims=True)       # (Cout, 1)
    ssq_ref[...] += jnp.sum(ym * y, axis=1, keepdims=True)

    # stash the raw conv output so it is never recomputed
    if nblocks > 1:
        y_ref[b] = y

    # ---- final grid step: fold BN, apply GELU, write the whole batch -------
    @pl.when(b == nblocks - 1)
    def _finalize():
        inv_m = 1.0 / m_valid
        mean = sum_ref[...] * inv_m                          # (Cout, 1)
        var = jnp.maximum(ssq_ref[...] * inv_m - mean * mean, 0.0)
        scale = gb_ref[:, 0:1] * jax.lax.rsqrt(var + _BN_EPS)
        shift = gb_ref[:, 1:2] - mean * scale
        for blk in range(nblocks):
            yb = y if nblocks == 1 else y_ref[blk]           # (Cout, nb*hw_c)
            g = _gelu_exact(yb * scale + shift)
            for i in range(nb):
                img = blk * nb + i
                if img < n_imgs:                             # skip batch padding
                    out_ref[img] = g[:, i * hw_c:(i + 1) * hw_c].astype(
                        out_ref.dtype)


# ---------------------------------------------------------------------------
# Wrapper
# ---------------------------------------------------------------------------
def conv2d_bn_gelu(x, w, gamma, beta, stride=(1, 1), out_dtype=jnp.float32):
    """x: (N, Cin, H, W) f32; w: (Cout, Cin, KH, KW) OIHW.  Returns NCHW f32.

    out_dtype=jnp.bfloat16 halves the writeback (useful on v5e); default f32
    matches the PyTorch module.
    """
    N, Cin, H, W = x.shape
    Cout, Cin_w, KH, KW = w.shape
    assert Cin == Cin_w
    sh, sw = stride
    Ho = (H - KH) // sh + 1
    Wo = (W - KW) // sw + 1
    HW = H * W
    T = KH * KW

    off_max = (KH - 1) * W + (KW - 1)
    HW_C = _round_up(HW, _LANE)        # lane-dense per-image compute width
    HWP = HW_C + off_max               # minimal pad (full-dim BlockSpec)

    taps = tuple(kh * W + kw for kh in range(KH) for kw in range(KW))
    K = T * Cin
    K_pad = _round_up(K, 8)

    # images folded per grid step (amortize per-step overhead)
    nb = max(1, min(N, _TARGET_LANES // HW_C))
    nblocks = -(-N // nb)
    N_pad = nblocks * nb
    W_LANES = nb * HW_C

    # slab/weight compute dtype: bf16 when Cin is packing aligned, else f32
    # rows so per-tap sublane stores stay simple masked stores.
    cdt = jnp.bfloat16 if Cin % 16 == 0 else jnp.float32

    # --- thin glue (no im2col blow-up) --------------------------------------
    x_flat = jnp.pad(x.reshape(N, Cin, HW).astype(jnp.bfloat16),
                     ((0, N_pad - N), (0, 0), (0, HWP - HW)))
    # (Cout, K_pad) with column index = tap*Cin + c
    w_stk = jnp.pad(w.transpose(0, 2, 3, 1).reshape(Cout, K).astype(cdt),
                    ((0, 0), (0, K_pad - K)))
    gb = jnp.stack([gamma, beta], axis=1).astype(jnp.float32)   # (Cout, 2)

    # static mask of valid full-width positions q = h*W + w (per image, tiled)
    q = np.arange(HW_C)
    h_idx, w_idx = q // W, q % W
    valid = ((q < HW) & (h_idx % sh == 0) & (w_idx % sw == 0)
             & (h_idx // sh < Ho) & (w_idx // sw < Wo))
    mask = jnp.asarray(np.tile(valid.astype(np.float32), nb)).reshape(1, W_LANES)

    out_isz = jnp.dtype(out_dtype).itemsize
    # derive the VMEM limit from the actual footprint; cap inside v7x budget
    vmem_need = (2 * nb * Cin * HWP * 2                # x blocks (double buf)
                 + Cout * K_pad * 4 + 4 * W_LANES + 8 * Cout
                 + N * Cout * HW_C * out_isz           # resident output
                 + nblocks * Cout * W_LANES * 4        # conv stash
                 + K_pad * W_LANES * jnp.dtype(cdt).itemsize
                 + (1 << 20))
    vmem_limit = int(min(48 << 20, max(32 << 20, vmem_need)))

    kernel = functools.partial(
        _fused_kernel, taps=taps, hw_c=HW_C, nb=nb, cin=Cin,
        n_imgs=N, m_valid=float(N * Ho * Wo), nblocks=nblocks)

    y_full = pl.pallas_call(
        kernel,
        out_shape=jax.ShapeDtypeStruct((N, Cout, HW_C), out_dtype),
        grid=(nblocks,),
        in_specs=[
            pl.BlockSpec((nb, Cin, HWP), lambda b: (b, 0, 0)),   # x (Nb images)
            pl.BlockSpec((Cout, K_pad), lambda b: (0, 0)),       # stacked weights
            pl.BlockSpec((Cout, 2), lambda b: (0, 0)),           # gamma|beta
            pl.BlockSpec((1, W_LANES), lambda b: (0, 0)),        # valid mask
        ],
        # resident whole-batch output, written once at the final grid step
        out_specs=pl.BlockSpec((N, Cout, HW_C), lambda b: (0, 0, 0)),
        scratch_shapes=[
            pltpu.VMEM((K_pad, W_LANES), cdt),                   # stacked slab
            pltpu.VMEM((nblocks, Cout, W_LANES), jnp.float32),   # conv stash
            pltpu.VMEM((Cout, 1), jnp.float32),                  # sum
            pltpu.VMEM((Cout, 1), jnp.float32),                  # sum of squares
        ],
        compiler_params=pltpu.CompilerParams(
            dimension_semantics=("arbitrary",),
            vmem_limit_bytes=vmem_limit),
        cost_estimate=pl.CostEstimate(
            flops=2 * N_pad * Cout * K_pad * HW_C + 16 * N * Cout * HW_C,
            transcendentals=2 * N * Cout * HW_C,
            bytes_accessed=int(N_pad * Cin * HWP * 2 + Cout * K_pad * 4
                               + N * Cout * HW_C * out_isz)),
    )(x_flat, w_stk, gb, mask)

    # strip full-width padding / stride phase -> valid NCHW outputs
    y4 = y_full[:, :, :HW].astype(jnp.float32).reshape(N, Cout, H, W)
    return y4[:, :, ::sh, ::sw][:, :, :Ho, :Wo]


# ---------------------------------------------------------------------------
# Pure-JAX reference (conv + training-mode BN + exact GELU); inputs quantized
# exactly like the kernel so the check validates the f32 accumulation.
# ---------------------------------------------------------------------------
def _reference(x, w, gamma, beta, stride):
    xq = x.astype(jnp.bfloat16).astype(jnp.float32)
    wq = (w.astype(jnp.bfloat16).astype(jnp.float32)
          if w.shape[1] % 16 == 0 else w.astype(jnp.float32))
    y = jax.lax.conv_general_dilated(
        xq, wq, window_strides=stride, padding="VALID",
        dimension_numbers=("NCHW", "OIHW", "NCHW"),
        precision=jax.lax.Precision.HIGHEST)
    mean = jnp.mean(y, axis=(0, 2, 3), keepdims=True)
    var = jnp.mean((y - mean) ** 2, axis=(0, 2, 3), keepdims=True)
    yn = (y - mean) / jnp.sqrt(var + _BN_EPS)
    yn = yn * gamma.reshape(1, -1, 1, 1) + beta.reshape(1, -1, 1, 1)
    return 0.5 * yn * (1.0 + jax.scipy.special.erf(yn / jnp.sqrt(2.0)))


if __name__ == "__main__":
    # Shapes consistent with the module: batch=2, input_dims=4, spatial=16x16,
    # output_dims=8, kernel_size=(3,3), stride=(1,1).
    N, Cin, H, W = 2, 4, 16, 16
    Cout, KH, KW = 8, 3, 3
    stride = (1, 1)

    key = jax.random.PRNGKey(0)
    kx, kw_key = jax.random.split(key)
    x = jax.random.normal(kx, (N, Cin, H, W), dtype=jnp.float32)
    w = jax.random.normal(kw_key, (Cout, Cin, KH, KW), dtype=jnp.float32)
    w = w / math.sqrt(Cin * KH * KW)
    gamma = jnp.linspace(0.5, 1.5, Cout).astype(jnp.float32)
    beta = jnp.linspace(-0.2, 0.3, Cout).astype(jnp.float32)

    fwd = jax.jit(lambda a, b, g, bt: conv2d_bn_gelu(a, b, g, bt, stride=stride))
    out = jax.block_until_ready(fwd(x, w, gamma, beta))
    ref = jax.block_until_ready(_reference(x, w, gamma, beta, stride))

    Ho, Wo = (H - KH) // stride[0] + 1, (W - KW) // stride[1] + 1
    assert out.shape == ref.shape == (N, Cout, Ho, Wo)
    np.testing.assert_allclose(np.asarray(out), np.asarray(ref),
                               atol=2e-2, rtol=2e-2)
    print("KERNEL_OK")
</pallas_src>

<mosaic_0001>
module attributes {stable_mosaic.version = 11 : i64} {
  func.func @_fused_kernel(%arg0: i32, %arg1: memref<2x4x290xbf16, #tpu.memory_space<vmem>>, %arg2: memref<8x40xf32, #tpu.memory_space<vmem>>, %arg3: memref<8x2xf32, #tpu.memory_space<vmem>>, %arg4: memref<1x512xf32, #tpu.memory_space<vmem>>, %arg5: memref<2x8x256xf32, #tpu.memory_space<vmem>>, %arg6: memref<40x512xf32, #tpu.memory_space<vmem>>, %arg7: memref<1x8x512xf32, #tpu.memory_space<vmem>>, %arg8: memref<8x1xf32, #tpu.memory_space<vmem>>, %arg9: memref<8x1xf32, #tpu.memory_space<vmem>>) attributes {dimension_semantics = [#tpu.dimension_semantics<arbitrary>], iteration_bounds = array<i64: 1>, scalar_prefetch = 0 : i64, scratch_operands = 4 : i64, tpu.core_type = #tpu.core_type<tc>, window_params = [{transform_indices = @transform_0, window_bounds = array<i64: 2, 4, 290>}, {pipeline_mode = #tpu.pipeline_mode<synchronous>, transform_indices = @transform_1, window_bounds = array<i64: 8, 40>}, {pipeline_mode = #tpu.pipeline_mode<synchronous>, transform_indices = @transform_2, window_bounds = array<i64: 8, 2>}, {pipeline_mode = #tpu.pipeline_mode<synchronous>, transform_indices = @transform_3, window_bounds = array<i64: 1, 512>}, {pipeline_mode = #tpu.pipeline_mode<synchronous>, transform_indices = @transform_4, window_bounds = array<i64: 2, 8, 256>}]} {
    %c0_i32 = arith.constant 0 : i32
    %0 = arith.cmpi eq, %arg0, %c0_i32 : i32
    %1 = arith.extui %0 : i1 to i32
    %c0_i32_0 = arith.constant 0 : i32
    %2 = arith.cmpi ne, %1, %c0_i32_0 : i32
    scf.if %2 {
      %cst_93 = arith.constant 0.000000e+00 : f32
      %95 = vector.broadcast %cst_93 : f32 to vector<8x1xf32>
      %c0_94 = arith.constant 0 : index
      %c0_95 = arith.constant 0 : index
      %96 = vector.load %arg8[%c0_94, %c0_95] : memref<8x1xf32, #tpu.memory_space<vmem>>, vector<8x1xf32>
      tpu.vector_store %arg8[%c0_94, %c0_95], %95 {strides = array<i32>} : memref<8x1xf32, #tpu.memory_space<vmem>>, vector<8x1xf32>,
      %cst_96 = arith.constant 0.000000e+00 : f32
      %97 = vector.broadcast %cst_96 : f32 to vector<8x1xf32>
      %c0_97 = arith.constant 0 : index
      %c0_98 = arith.constant 0 : index
      %98 = vector.load %arg9[%c0_97, %c0_98] : memref<8x1xf32, #tpu.memory_space<vmem>>, vector<8x1xf32>
      tpu.vector_store %arg9[%c0_97, %c0_98], %97 {strides = array<i32>} : memref<8x1xf32, #tpu.memory_space<vmem>>, vector<8x1xf32>,
      %cst_99 = arith.constant 0.000000e+00 : f32
      %99 = vector.broadcast %cst_99 : f32 to vector<40x512xf32>
      %c0_100 = arith.constant 0 : index
      %c0_101 = arith.constant 0 : index
      %100 = vector.load %arg6[%c0_100, %c0_101] : memref<40x512xf32, #tpu.memory_space<vmem>>, vector<40x512xf32>
      tpu.vector_store %arg6[%c0_100, %c0_101], %99 {strides = array<i32>} : memref<40x512xf32, #tpu.memory_space<vmem>>, vector<40x512xf32>,
    } else {
    }
    %c0 = arith.constant 0 : index
    %c0_1 = arith.constant 0 : index
    %c0_2 = arith.constant 0 : index
    %3 = vector.load %arg1[%c0, %c0_1, %c0_2] : memref<2x4x290xbf16, #tpu.memory_space<vmem>>, vector<1x4x256xbf16>
    %4 = vector.shape_cast %3 : vector<1x4x256xbf16> to vector<4x256xbf16>
    %5 = arith.extf %4 : vector<4x256xbf16> to vector<4x256xf32>
    %c0_3 = arith.constant 0 : index
    %c0_4 = arith.constant 0 : index
    %6 = vector.load %arg6[%c0_3, %c0_4] : memref<40x512xf32, #tpu.memory_space<vmem>>, vector<4x256xf32>
    tpu.vector_store %arg6[%c0_3, %c0_4], %5 {strides = array<i32>} : memref<40x512xf32, #tpu.memory_space<vmem>>, vector<4x256xf32>,
    %c0_5 = arith.constant 0 : index
    %c0_6 = arith.constant 0 : index
    %c1 = arith.constant 1 : index
    %7 = vector.load %arg1[%c0_5, %c0_6, %c1] : memref<2x4x290xbf16, #tpu.memory_space<vmem>>, vector<1x4x256xbf16>
    %8 = vector.shape_cast %7 : vector<1x4x256xbf16> to vector<4x256xbf16>
    %9 = arith.extf %8 : vector<4x256xbf16> to vector<4x256xf32>
    %c4 = arith.constant 4 : index
    %c0_7 = arith.constant 0 : index
    %10 = vector.load %arg6[%c4, %c0_7] : memref<40x512xf32, #tpu.memory_space<vmem>>, vector<4x256xf32>
    tpu.vector_store %arg6[%c4, %c0_7], %9 {strides = array<i32>} : memref<40x512xf32, #tpu.memory_space<vmem>>, vector<4x256xf32>,
    %c0_8 = arith.constant 0 : index
    %c0_9 = arith.constant 0 : index
    %c2 = arith.constant 2 : index
    %11 = vector.load %arg1[%c0_8, %c0_9, %c2] : memref<2x4x290xbf16, #tpu.memory_space<vmem>>, vector<1x4x256xbf16>
    %12 = vector.shape_cast %11 : vector<1x4x256xbf16> to vector<4x256xbf16>
    %13 = arith.extf %12 : vector<4x256xbf16> to vector<4x256xf32>
    %c8 = arith.constant 8 : index
    %c0_10 = arith.constant 0 : index
    %14 = vector.load %arg6[%c8, %c0_10] : memref<40x512xf32, #tpu.memory_space<vmem>>, vector<4x256xf32>
    tpu.vector_store %arg6[%c8, %c0_10], %13 {strides = array<i32>} : memref<40x512xf32, #tpu.memory_space<vmem>>, vector<4x256xf32>,
    %c0_11 = arith.constant 0 : index
    %c0_12 = arith.constant 0 : index
    %c16 = arith.constant 16 : index
    %15 = vector.load %arg1[%c0_11, %c0_12, %c16] : memref<2x4x290xbf16, #tpu.memory_space<vmem>>, vector<1x4x256xbf16>
    %16 = vector.shape_cast %15 : vector<1x4x256xbf16> to vector<4x256xbf16>
    %17 = arith.extf %16 : vector<4x256xbf16> to vector<4x256xf32>
    %c12 = arith.constant 12 : index
    %c0_13 = arith.constant 0 : index
    %18 = vector.load %arg6[%c12, %c0_13] : memref<40x512xf32, #tpu.memory_space<vmem>>, vector<4x256xf32>
    tpu.vector_store %arg6[%c12, %c0_13], %17 {strides = array<i32>} : memref<40x512xf32, #tpu.memory_space<vmem>>, vector<4x256xf32>,
    %c0_14 = arith.constant 0 : index
    %c0_15 = arith.constant 0 : index
    %c17 = arith.constant 17 : index
    %19 = vector.load %arg1[%c0_14, %c0_15, %c17] : memref<2x4x290xbf16, #tpu.memory_space<vmem>>, vector<1x4x256xbf16>
    %20 = vector.shape_cast %19 : vector<1x4x256xbf16> to vector<4x256xbf16>
    %21 = arith.extf %20 : vector<4x256xbf16> to vector<4x256xf32>
    %c16_16 = arith.constant 16 : index
    %c0_17 = arith.constant 0 : index
    %22 = vector.load %arg6[%c16_16, %c0_17] : memref<40x512xf32, #tpu.memory_space<vmem>>, vector<4x256xf32>
    tpu.vector_store %arg6[%c16_16, %c0_17], %21 {strides = array<i32>} : memref<40x512xf32, #tpu.memory_space<vmem>>, vector<4x256xf32>,
    %c0_18 = arith.constant 0 : index
    %c0_19 = arith.constant 0 : index
    %c18 = arith.constant 18 : index
    %23 = vector.load %arg1[%c0_18, %c0_19, %c18] : memref<2x4x290xbf16, #tpu.memory_space<vmem>>, vector<1x4x256xbf16>
    %24 = vector.shape_cast %23 : vector<1x4x256xbf16> to vector<4x256xbf16>
    %25 = arith.extf %24 : vector<4x256xbf16> to vector<4x256xf32>
    %c20 = arith.constant 20 : index
    %c0_20 = arith.constant 0 : index
    %26 = vector.load %arg6[%c20, %c0_20] : memref<40x512xf32, #tpu.memory_space<vmem>>, vector<4x256xf32>
    tpu.vector_store %arg6[%c20, %c0_20], %25 {strides = array<i32>} : memref<40x512xf32, #tpu.memory_space<vmem>>, vector<4x256xf32>,
    %c0_21 = arith.constant 0 : index
    %c0_22 = arith.constant 0 : index
    %c32 = arith.constant 32 : index
    %27 = vector.load %arg1[%c0_21, %c0_22, %c32] : memref<2x4x290xbf16, #tpu.memory_space<vmem>>, vector<1x4x256xbf16>
    %28 = vector.shape_cast %27 : vector<1x4x256xbf16> to vector<4x256xbf16>
    %29 = arith.extf %28 : vector<4x256xbf16> to vector<4x256xf32>
    %c24 = arith.constant 24 : index
    %c0_23 = arith.constant 0 : index
    %30 = vector.load %arg6[%c24, %c0_23] : memref<40x512xf32, #tpu.memory_space<vmem>>, vector<4x256xf32>
    tpu.vector_store %arg6[%c24, %c0_23], %29 {strides = array<i32>} : memref<40x512xf32, #tpu.memory_space<vmem>>, vector<4x256xf32>,
    %c0_24 = arith.constant 0 : index
    %c0_25 = arith.constant 0 : index
    %c33 = arith.constant 33 : index
    %31 = vector.load %arg1[%c0_24, %c0_25, %c33] : memref<2x4x290xbf16, #tpu.memory_space<vmem>>, vector<1x4x256xbf16>
    %32 = vector.shape_cast %31 : vector<1x4x256xbf16> to vector<4x256xbf16>
    %33 = arith.extf %32 : vector<4x256xbf16> to vector<4x256xf32>
    %c28 = arith.constant 28 : index
    %c0_26 = arith.constant 0 : index
    %34 = vector.load %arg6[%c28, %c0_26] : memref<40x512xf32, #tpu.memory_space<vmem>>, vector<4x256xf32>
    tpu.vector_store %arg6[%c28, %c0_26], %33 {strides = array<i32>} : memref<40x512xf32, #tpu.memory_space<vmem>>, vector<4x256xf32>,
    %c0_27 = arith.constant 0 : index
    %c0_28 = arith.constant 0 : index
    %c34 = arith.constant 34 : index
    %35 = vector.load %arg1[%c0_27, %c0_28, %c34] : memref<2x4x290xbf16, #tpu.memory_space<vmem>>, vector<1x4x256xbf16>
    %36 = vector.shape_cast %35 : vector<1x4x256xbf16> to vector<4x256xbf16>
    %37 = arith.extf %36 : vector<4x256xbf16> to vector<4x256xf32>
    %c32_29 = arith.constant 32 : index
    %c0_30 = arith.constant 0 : index
    %38 = vector.load %arg6[%c32_29, %c0_30] : memref<40x512xf32, #tpu.memory_space<vmem>>, vector<4x256xf32>
    tpu.vector_store %arg6[%c32_29, %c0_30], %37 {strides = array<i32>} : memref<40x512xf32, #tpu.memory_space<vmem>>, vector<4x256xf32>,
    %c1_31 = arith.constant 1 : index
    %c0_32 = arith.constant 0 : index
    %c0_33 = arith.constant 0 : index
    %39 = vector.load %arg1[%c1_31, %c0_32, %c0_33] : memref<2x4x290xbf16, #tpu.memory_space<vmem>>, vector<1x4x256xbf16>
    %40 = vector.shape_cast %39 : vector<1x4x256xbf16> to vector<4x256xbf16>
    %41 = arith.extf %40 : vector<4x256xbf16> to vector<4x256xf32>
    %c0_34 = arith.constant 0 : index
    %c256 = arith.constant 256 : index
    %42 = vector.load %arg6[%c0_34, %c256] : memref<40x512xf32, #tpu.memory_space<vmem>>, vector<4x256xf32>
    tpu.vector_store %arg6[%c0_34, %c256], %41 {strides = array<i32>} : memref<40x512xf32, #tpu.memory_space<vmem>>, vector<4x256xf32>,
    %c1_35 = arith.constant 1 : index
    %c0_36 = arith.constant 0 : index
    %c1_37 = arith.constant 1 : index
    %43 = vector.load %arg1[%c1_35, %c0_36, %c1_37] : memref<2x4x290xbf16, #tpu.memory_space<vmem>>, vector<1x4x256xbf16>
    %44 = vector.shape_cast %43 : vector<1x4x256xbf16> to vector<4x256xbf16>
    %45 = arith.extf %44 : vector<4x256xbf16> to vector<4x256xf32>
    %c4_38 = arith.constant 4 : index
    %c256_39 = arith.constant 256 : index
    %46 = vector.load %arg6[%c4_38, %c256_39] : memref<40x512xf32, #tpu.memory_space<vmem>>, vector<4x256xf32>
    tpu.vector_store %arg6[%c4_38, %c256_39], %45 {strides = array<i32>} : memref<40x512xf32, #tpu.memory_space<vmem>>, vector<4x256xf32>,
    %c1_40 = arith.constant 1 : index
    %c0_41 = arith.constant 0 : index
    %c2_42 = arith.constant 2 : index
    %47 = vector.load %arg1[%c1_40, %c0_41, %c2_42] : memref<2x4x290xbf16, #tpu.memory_space<vmem>>, vector<1x4x256xbf16>
    %48 = vector.shape_cast %47 : vector<1x4x256xbf16> to vector<4x256xbf16>
    %49 = arith.extf %48 : vector<4x256xbf16> to vector<4x256xf32>
    %c8_43 = arith.constant 8 : index
    %c256_44 = arith.constant 256 : index
    %50 = vector.load %arg6[%c8_43, %c256_44] : memref<40x512xf32, #tpu.memory_space<vmem>>, vector<4x256xf32>
    tpu.vector_store %arg6[%c8_43, %c256_44], %49 {strides = array<i32>} : memref<40x512xf32, #tpu.memory_space<vmem>>, vector<4x256xf32>,
    %c1_45 = arith.constant 1 : index
    %c0_46 = arith.constant 0 : index
    %c16_47 = arith.constant 16 : index
    %51 = vector.load %arg1[%c1_45, %c0_46, %c16_47] : memref<2x4x290xbf16, #tpu.memory_space<vmem>>, vector<1x4x256xbf16>
    %52 = vector.shape_cast %51 : vector<1x4x256xbf16> to vector<4x256xbf16>
    %53 = arith.extf %52 : vector<4x256xbf16> to vector<4x256xf32>
    %c12_48 = arith.constant 12 : index
    %c256_49 = arith.constant 256 : index
    %54 = vector.load %arg6[%c12_48, %c256_49] : memref<40x512xf32, #tpu.memory_space<vmem>>, vector<4x256xf32>
    tpu.vector_store %arg6[%c12_48, %c256_49], %53 {strides = array<i32>} : memref<40x512xf32, #tpu.memory_space<vmem>>, vector<4x256xf32>,
    %c1_50 = arith.constant 1 : index
    %c0_51 = arith.constant 0 : index
    %c17_52 = arith.constant 17 : index
    %55 = vector.load %arg1[%c1_50, %c0_51, %c17_52] : memref<2x4x290xbf16, #tpu.memory_space<vmem>>, vector<1x4x256xbf16>
    %56 = vector.shape_cast %55 : vector<1x4x256xbf16> to vector<4x256xbf16>
    %57 = arith.extf %56 : vector<4x256xbf16> to vector<4x256xf32>
    %c16_53 = arith.constant 16 : index
    %c256_54 = arith.constant 256 : index
    %58 = vector.load %arg6[%c16_53, %c256_54] : memref<40x512xf32, #tpu.memory_space<vmem>>, vector<4x256xf32>
    tpu.vector_store %arg6[%c16_53, %c256_54], %57 {strides = array<i32>} : memref<40x512xf32, #tpu.memory_space<vmem>>, vector<4x256xf32>,
    %c1_55 = arith.constant 1 : index
    %c0_56 = arith.constant 0 : index
    %c18_57 = arith.constant 18 : index
    %59 = vector.load %arg1[%c1_55, %c0_56, %c18_57] : memref<2x4x290xbf16, #tpu.memory_space<vmem>>, vector<1x4x256xbf16>
    %60 = vector.shape_cast %59 : vector<1x4x256xbf16> to vector<4x256xbf16>
    %61 = arith.extf %60 : vector<4x256xbf16> to vector<4x256xf32>
    %c20_58 = arith.constant 20 : index
    %c256_59 = arith.constant 256 : index
    %62 = vector.load %arg6[%c20_58, %c256_59] : memref<40x512xf32, #tpu.memory_space<vmem>>, vector<4x256xf32>
    tpu.vector_store %arg6[%c20_58, %c256_59], %61 {strides = array<i32>} : memref<40x512xf32, #tpu.memory_space<vmem>>, vector<4x256xf32>,
    %c1_60 = arith.constant 1 : index
    %c0_61 = arith.constant 0 : index
    %c32_62 = arith.constant 32 : index
    %63 = vector.load %arg1[%c1_60, %c0_61, %c32_62] : memref<2x4x290xbf16, #tpu.memory_space<vmem>>, vector<1x4x256xbf16>
    %64 = vector.shape_cast %63 : vector<1x4x256xbf16> to vector<4x256xbf16>
    %65 = arith.extf %64 : vector<4x256xbf16> to vector<4x256xf32>
    %c24_63 = arith.constant 24 : index
    %c256_64 = arith.constant 256 : index
    %66 = vector.load %arg6[%c24_63, %c256_64] : memref<40x512xf32, #tpu.memory_space<vmem>>, vector<4x256xf32>
    tpu.vector_store %arg6[%c24_63, %c256_64], %65 {strides = array<i32>} : memref<40x512xf32, #tpu.memory_space<vmem>>, vector<4x256xf32>,
    %c1_65 = arith.constant 1 : index
    %c0_66 = arith.constant 0 : index
    %c33_67 = arith.constant 33 : index
    %67 = vector.load %arg1[%c1_65, %c0_66, %c33_67] : memref<2x4x290xbf16, #tpu.memory_space<vmem>>, vector<1x4x256xbf16>
    %68 = vector.shape_cast %67 : vector<1x4x256xbf16> to vector<4x256xbf16>
    %69 = arith.extf %68 : vector<4x256xbf16> to vector<4x256xf32>
    %c28_68 = arith.constant 28 : index
    %c256_69 = arith.constant 256 : index
    %70 = vector.load %arg6[%c28_68, %c256_69] : memref<40x512xf32, #tpu.memory_space<vmem>>, vector<4x256xf32>
    tpu.vector_store %arg6[%c28_68, %c256_69], %69 {strides = array<i32>} : memref<40x512xf32, #tpu.memory_space<vmem>>, vector<4x256xf32>,
    %c1_70 = arith.constant 1 : index
    %c0_71 = arith.constant 0 : index
    %c34_72 = arith.constant 34 : index
    %71 = vector.load %arg1[%c1_70, %c0_71, %c34_72] : memref<2x4x290xbf16, #tpu.memory_space<vmem>>, vector<1x4x256xbf16>
    %72 = vector.shape_cast %71 : vector<1x4x256xbf16> to vector<4x256xbf16>
    %73 = arith.extf %72 : vector<4x256xbf16> to vector<4x256xf32>
    %c32_73 = arith.constant 32 : index
    %c256_74 = arith.constant 256 : index
    %74 = vector.load %arg6[%c32_73, %c256_74] : memref<40x512xf32, #tpu.memory_space<vmem>>, vector<4x256xf32>
    tpu.vector_store %arg6[%c32_73, %c256_74], %73 {strides = array<i32>} : memref<40x512xf32, #tpu.memory_space<vmem>>, vector<4x256xf32>,
    %c0_75 = arith.constant 0 : index
    %c0_76 = arith.constant 0 : index
    %75 = vector.load %arg2[%c0_75, %c0_76] : memref<8x40xf32, #tpu.memory_space<vmem>>, vector<8x40xf32>
    %c0_77 = arith.constant 0 : index
    %c0_78 = arith.constant 0 : index
    %76 = vector.load %arg6[%c0_77, %c0_78] : memref<40x512xf32, #tpu.memory_space<vmem>>, vector<40x512xf32>
    %cst = arith.constant dense<0.000000e+00> : vector<8x512xf32>
    %77 = tpu.matmul %75, %76, %cst {dimension_numbers = #tpu.dot_dimension_numbers<[1], [0], [0], [1], [0, 0, 1, 1], [], []>} : vector<8x40xf32>, vector<40x512xf32>, vector<8x512xf32> -> vector<8x512xf32>
    %c0_79 = arith.constant 0 : index
    %c0_80 = arith.constant 0 : index
    %78 = vector.load %arg4[%c0_79, %c0_80] : memref<1x512xf32, #tpu.memory_space<vmem>>, vector<1x512xf32>
    %79 = vector.broadcast %78 : vector<1x512xf32> to vector<8x512xf32>
    %80 = arith.mulf %77, %79 : vector<8x512xf32>
    %c0_81 = arith.constant 0 : index
    %c0_82 = arith.constant 0 : index
    %81 = vector.load %arg8[%c0_81, %c0_82] : memref<8x1xf32, #tpu.memory_space<vmem>>, vector<8x1xf32>
    %cst_83 = arith.constant dense<0.000000e+00> : vector<8xf32>
    %82 = vector.multi_reduction <add>, %80, %cst_83 [1] : vector<8x512xf32> to vector<8xf32>
    %83 = vector.shape_cast %82 : vector<8xf32> to vector<8x1xf32>
    %84 = arith.addf %81, %83 : vector<8x1xf32>
    %c0_84 = arith.constant 0 : index
    %c0_85 = arith.constant 0 : index
    %85 = vector.load %arg8[%c0_84, %c0_85] : memref<8x1xf32, #tpu.memory_space<vmem>>, vector<8x1xf32>
    tpu.vector_store %arg8[%c0_84, %c0_85], %84 {strides = array<i32>} : memref<8x1xf32, #tpu.memory_space<vmem>>, vector<8x1xf32>,
    %c0_86 = arith.constant 0 : index
    %c0_87 = arith.constant 0 : index
    %86 = vector.load %arg9[%c0_86, %c0_87] : memref<8x1xf32, #tpu.memory_space<vmem>>, vector<8x1xf32>
    %87 = arith.mulf %80, %77 : vector<8x512xf32>
    %cst_88 = arith.constant dense<0.000000e+00> : vector<8xf32>
    %88 = vector.multi_reduction <add>, %87, %cst_88 [1] : vector<8x512xf32> to vector<8xf32>
    %89 = vector.shape_cast %88 : vector<8xf32> to vector<8x1xf32>
    %90 = arith.addf %86, %89 : vector<8x1xf32>
    %c0_89 = arith.constant 0 : index
    %c0_90 = arith.constant 0 : index
    %91 = vector.load %arg9[%c0_89, %c0_90] : memref<8x1xf32, #tpu.memory_space<vmem>>, vector<8x1xf32>
    tpu.vector_store %arg9[%c0_89, %c0_90], %90 {strides = array<i32>} : memref<8x1xf32, #tpu.memory_space<vmem>>, vector<8x1xf32>,
    %c0_i32_91 = arith.constant 0 : i32
    %92 = arith.cmpi eq, %arg0, %c0_i32_91 : i32
    %93 = arith.extui %92 : i1 to i32
    %c0_i32_92 = arith.constant 0 : i32
    %94 = arith.cmpi ne, %93, %c0_i32_92 : i32
    scf.if %94 {
      %c0_93 = arith.constant 0 : index
      %c0_94 = arith.constant 0 : index
      %95 = vector.load %arg8[%c0_93, %c0_94] : memref<8x1xf32, #tpu.memory_space<vmem>>, vector<8x1xf32>
      %cst_95 = arith.constant 0.00255102036 : f32
      %96 = vector.broadcast %cst_95 : f32 to vector<8x1xf32>
      %97 = arith.mulf %95, %96 : vector<8x1xf32>
      %c0_96 = arith.constant 0 : index
      %c0_97 = arith.constant 0 : index
      %98 = vector.load %arg9[%c0_96, %c0_97] : memref<8x1xf32, #tpu.memory_space<vmem>>, vector<8x1xf32>
      %cst_98 = arith.constant 0.00255102036 : f32
      %99 = vector.broadcast %cst_98 : f32 to vector<8x1xf32>
      %100 = arith.mulf %98, %99 : vector<8x1xf32>
      %101 = arith.mulf %97, %97 : vector<8x1xf32>
      %102 = arith.subf %100, %101 : vector<8x1xf32>
      %cst_99 = arith.constant 0.000000e+00 : f32
      %103 = vector.broadcast %cst_99 : f32 to vector<8x1xf32>
      %104 = arith.maximumf %102, %103 : vector<8x1xf32>
      %c0_100 = arith.constant 0 : index
      %c0_101 = arith.constant 0 : index
      %105 = vector.load %arg3[%c0_100, %c0_101] : memref<8x2xf32, #tpu.memory_space<vmem>>, vector<8x1xf32>
      %cst_102 = arith.constant 9.99999974E-6 : f32
      %106 = vector.broadcast %cst_102 : f32 to vector<8x1xf32>
      %107 = arith.addf %104, %106 : vector<8x1xf32>
      %108 = math.rsqrt %107 : vector<8x1xf32>
      %109 = arith.mulf %105, %108 : vector<8x1xf32>
      %c0_103 = arith.constant 0 : index
      %c1_104 = arith.constant 1 : index
      %110 = vector.load %arg3[%c0_103, %c1_104] : memref<8x2xf32, #tpu.memory_space<vmem>>, vector<8x1xf32>
      %111 = arith.mulf %97, %109 : vector<8x1xf32>
      %112 = arith.subf %110, %111 : vector<8x1xf32>
      %113 = vector.broadcast %109 : vector<8x1xf32> to vector<8x512xf32>
      %114 = arith.mulf %77, %113 : vector<8x512xf32>
      %115 = vector.broadcast %112 : vector<8x1xf32> to vector<8x512xf32>
      %116 = arith.addf %114, %115 : vector<8x512xf32>
      %cst_105 = arith.constant 5.000000e-01 : f32
      %117 = vector.broadcast %cst_105 : f32 to vector<8x512xf32>
      %118 = arith.mulf %117, %116 : vector<8x512xf32>
      %cst_106 = arith.constant 0.707106769 : f32
      %119 = vector.broadcast %cst_106 : f32 to vector<8x512xf32>
      %120 = arith.mulf %116, %119 : vector<8x512xf32>
      %cst_107 = arith.constant 0.000000e+00 : f32
      %121 = vector.broadcast %cst_107 : f32 to vector<8x512xf32>
      %122 = arith.cmpf oge, %120, %121 : vector<8x512xf32>
      %cst_108 = arith.constant 1.000000e+00 : f32
      %cst_109 = arith.constant -1.000000e+00 : f32
      %123 = vector.broadcast %cst_108 : f32 to vector<8x512xf32>
      %124 = vector.broadcast %cst_109 : f32 to vector<8x512xf32>
      %125 = arith.select %122, %123, %124 : vector<8x512xi1>, vector<8x512xf32>
      %126 = math.absf %120 : vector<8x512xf32>
      %cst_110 = arith.constant 0.327591091 : f32
      %127 = vector.broadcast %cst_110 : f32 to vector<8x512xf32>
      %128 = arith.mulf %127, %126 : vector<8x512xf32>
      %cst_111 = arith.constant 1.000000e+00 : f32
      %129 = vector.broadcast %cst_111 : f32 to vector<8x512xf32>
      %130 = arith.addf %129, %128 : vector<8x512xf32>
      %131 = tpu.reciprocal %130 {approx = true} : vector<8x512xf32> -> vector<8x512xf32>
      %cst_112 = arith.constant 1.06140542 : f32
      %132 = vector.broadcast %cst_112 : f32 to vector<8x512xf32>
      %133 = arith.mulf %132, %131 : vector<8x512xf32>
      %cst_113 = arith.constant -1.45315206 : f32
      %134 = vector.broadcast %cst_113 : f32 to vector<8x512xf32>
      %135 = arith.addf %133, %134 : vector<8x512xf32>
      %136 = arith.mulf %135, %131 : vector<8x512xf32>
      %cst_114 = arith.constant 1.42141378 : f32
      %137 = vector.broadcast %cst_114 : f32 to vector<8x512xf32>
      %138 = arith.addf %136, %137 : vector<8x512xf32>
      %139 = arith.mulf %138, %131 : vector<8x512xf32>
      %cst_115 = arith.constant -0.284496725 : f32
      %140 = vector.broadcast %cst_115 : f32 to vector<8x512xf32>
      %141 = arith.addf %139, %140 : vector<8x512xf32>
      %142 = arith.mulf %141, %131 : vector<8x512xf32>
      %cst_116 = arith.constant 0.254829586 : f32
      %143 = vector.broadcast %cst_116 : f32 to vector<8x512xf32>
      %144 = arith.addf %142, %143 : vector<8x512xf32>
      %145 = arith.mulf %144, %131 : vector<8x512xf32>
      %cst_117 = arith.constant 0.000000e+00 : f32
      %146 = vector.broadcast %cst_117 : f32 to vector<8x512xf32>
      %147 = arith.subf %146, %126 : vector<8x512xf32>
      %148 = arith.mulf %147, %126 : vector<8x512xf32>
      %149 = math.exp %148 : vector<8x512xf32>
      %150 = arith.mulf %145, %149 : vector<8x512xf32>
      %cst_118 = arith.constant 1.000000e+00 : f32
      %151 = vector.broadcast %cst_118 : f32 to vector<8x512xf32>
      %152 = arith.subf %151, %150 : vector<8x512xf32>
      %153 = arith.mulf %125, %152 : vector<8x512xf32>
      %cst_119 = arith.constant 1.000000e+00 : f32
      %154 = vector.broadcast %cst_119 : f32 to vector<8x512xf32>
      %155 = arith.addf %154, %153 : vector<8x512xf32>
      %156 = arith.mulf %118, %155 : vector<8x512xf32>
      %157 = vector.extract_strided_slice %156 {offsets = [0, 0], sizes = [8, 256], strides = [1, 1]} : vector<8x512xf32> to vector<8x256xf32>
      %c0_120 = arith.constant 0 : index
      %c0_121 = arith.constant 0 : index
      %c0_122 = arith.constant 0 : index
      %158 = vector.load %arg5[%c0_120, %c0_121, %c0_122] : memref<2x8x256xf32, #tpu.memory_space<vmem>>, vector<1x8x256xf32>
      %159 = vector.shape_cast %158 : vector<1x8x256xf32> to vector<8x256xf32>
      %160 = vector.shape_cast %157 : vector<8x256xf32> to vector<1x8x256xf32>
      tpu.vector_store %arg5[%c0_120, %c0_121, %c0_122], %160 {strides = array<i32>} : memref<2x8x256xf32, #tpu.memory_space<vmem>>, vector<1x8x256xf32>,
      %161 = vector.extract_strided_slice %156 {offsets = [0, 256], sizes = [8, 256], strides = [1, 1]} : vector<8x512xf32> to vector<8x256xf32>
      %c1_123 = arith.constant 1 : index
      %c0_124 = arith.constant 0 : index
      %c0_125 = arith.constant 0 : index
      %162 = vector.load %arg5[%c1_123, %c0_124, %c0_125] : memref<2x8x256xf32, #tpu.memory_space<vmem>>, vector<1x8x256xf32>
      %163 = vector.shape_cast %162 : vector<1x8x256xf32> to vector<8x256xf32>
      %164 = vector.shape_cast %161 : vector<8x256xf32> to vector<1x8x256xf32>
      tpu.vector_store %arg5[%c1_123, %c0_124, %c0_125], %164 {strides = array<i32>} : memref<2x8x256xf32, #tpu.memory_space<vmem>>, vector<1x8x256xf32>,
    } else {
    }
    return
  }
  func.func @transform_0(%arg0: i32) -> (i32, i32, i32) {
    %c0_i32 = arith.constant 0 : i32
    %c0_i32_0 = arith.constant 0 : i32
    %c0_i32_1 = arith.constant 0 : i32
    return %arg0, %c0_i32, %c0_i32_0 : i32, i32, i32
  }
  func.func @transform_1(%arg0: i32) -> (i32, i32) {
    %c0_i32 = arith.constant 0 : i32
    %c0_i32_0 = arith.constant 0 : i32
    %c0_i32_1 = arith.constant 0 : i32
    return %c0_i32, %c0_i32_0 : i32, i32
  }
  func.func @transform_2(%arg0: i32) -> (i32, i32) {
    %c0_i32 = arith.constant 0 : i32
    %c0_i32_0 = arith.constant 0 : i32
    %c0_i32_1 = arith.constant 0 : i32
    return %c0_i32, %c0_i32_0 : i32, i32
  }
  func.func @transform_3(%arg0: i32) -> (i32, i32) {
    %c0_i32 = arith.constant 0 : i32
    %c0_i32_0 = arith.constant 0 : i32
    %c0_i32_1 = arith.constant 0 : i32
    return %c0_i32, %c0_i32_0 : i32, i32
  }
  func.func @transform_4(%arg0: i32) -> (i32, i32, i32) {
    %c0_i32 = arith.constant 0 : i32
    %c0_i32_0 = arith.constant 0 : i32
    %c0_i32_1 = arith.constant 0 : i32
    %c0_i32_2 = arith.constant 0 : i32
    return %c0_i32, %c0_i32_0, %c0_i32_1 : i32, i32, i32
  }
}

</mosaic_0001>

<llo_original>
// kernel: _lambda_.1
$region0: #{_lambda_.1}
  #allocation0 [shape = 'u32[]', space=smem, size = 0x4, offset = 0x4, fixed_abs, tag = 'smem constant byte address 0x4 - core index']
  #allocation1 [shape = 'u32[144,128]{1,0:T(1,128)}', space=vmem, size = 0x12000, scoped, tag = 'internal scratch']
  #allocation2 [shape = 'f32[40,512]{1,0:T(8,128)}', space=vmem, size = 0x14000, scoped, tag = 'scratch operand']
  #allocation3 [shape = 'f32[1,8,512]{2,1,0:T(8,128)}', space=vmem, size = 0x4000, scoped, tag = 'scratch operand']
  #allocation4 [shape = 'f32[8,1]{1,0:T(8,128)}', space=vmem, size = 0x1000, scoped, tag = 'scratch operand']
  #allocation5 [shape = 'f32[8,1]{1,0:T(8,128)}', space=vmem, size = 0x1000, scoped, tag = 'scratch operand']
  %s0 = inlined_call_operand.vmem [shape: bf16[2,4,290], index: 0, kind: input, shape index: {}]
  %s1 = inlined_call_operand.vmem [shape: f32[8,40], index: 1, kind: input, shape index: {}]
  %s2 = inlined_call_operand.vmem [shape: f32[8,2], index: 2, kind: input, shape index: {}]
  %s3 = inlined_call_operand.vmem [shape: f32[1,512], index: 3, kind: input, shape index: {}]
  %s4 = inlined_call_operand.vmem [shape: f32[2,8,256], index: 4, kind: output, shape index: {}]
  %s5 = sld [smem:[#allocation0]]
  $region34: #{_lambda_.1} parent=0
    _
  %s7 = ssub.s32 1, %s5
  %s8 = scalar_select 0, %s7, %s5
  // Predicated region
  $region2: #{_lambda_.1} parent=0 // pred_check
    _
  $region3: #{_lambda_.1} parent=0 // pred_check_branch
    %10 = sbr.rel (0) target = $region5
  $region4: #{_lambda_.1} parent=0 // pred_region
    _
  $region5: #{_lambda_.1} parent=0 // pred_fallthru
    _
  // Predicated region
  $region6: #{_lambda_.1} parent=0 // pred_check
    _
  $region7: #{_lambda_.1} parent=0 // pred_check_branch
    %12 = sbr.rel (0) target = $region9
  $region8: #{_lambda_.1} parent=0 // pred_region
    _
  $region9: #{_lambda_.1} parent=0 // pred_fallthru
    _
  // Predicated region
  $region10: #{_lambda_.1} parent=0 // pred_check
    _
  $region11: #{_lambda_.1} parent=0 // pred_check_branch
    %14 = sbr.rel (0) target = $region13
  $region12: #{_lambda_.1} parent=0 // pred_region
    _
  $region13: #{_lambda_.1} parent=0 // pred_fallthru
    _
  // Predicated region
  $region14: #{_lambda_.1} parent=0 // pred_check
    _
  $region15: #{_lambda_.1} parent=0 // pred_check_branch
    %16 = sbr.rel (0) target = $region17
  $region16: #{_lambda_.1} parent=0 // pred_region
    _
  $region17: #{_lambda_.1} parent=0 // pred_fallthru
    _
  %p17 = scmp.eq.s32.totalorder 0, 0
  // Predicated region
  $region18: #{_lambda_.1} parent=0 // pred_check
    %p18 = pneg %p17
  $region19: #{_lambda_.1} parent=0 // pred_check_branch
    %20 = sbr.rel (%p18) target = $region21
  $region20: #{_lambda_.1} parent=0 // pred_region
    %vm21 = vcmask 7168
    %22 = vst.msk [vmem:[#allocation4] sm:$0xff] %vm21, 0.0
    %23 = vst.msk [vmem:[#allocation5] sm:$0xff] %vm21, 0.0
    %24 = vst [vmem:[#allocation2] sm:$0xff] 0.0
    %25 = vst [vmem:[#allocation2 + $0x8] sm:$0xff] 0.0
    %26 = vst [vmem:[#allocation2 + $0x10] sm:$0xff] 0.0
    %27 = vst [vmem:[#allocation2 + $0x18] sm:$0xff] 0.0
    %28 = vst [vmem:[#allocation2 + $0x20] sm:$0xff] 0.0
    %29 = vst [vmem:[#allocation2 + $0x28] sm:$0xff] 0.0
    %30 = vst [vmem:[#allocation2 + $0x30] sm:$0xff] 0.0
    %31 = vst [vmem:[#allocation2 + $0x38] sm:$0xff] 0.0
    %32 = vst [vmem:[#allocation2 + $0x40] sm:$0xff] 0.0
    %33 = vst [vmem:[#allocation2 + $0x48] sm:$0xff] 0.0
    %34 = vst [vmem:[#allocation2 + $0x50] sm:$0xff] 0.0
    %35 = vst [vmem:[#allocation2 + $0x58] sm:$0xff] 0.0
    %36 = vst [vmem:[#allocation2 + $0x60] sm:$0xff] 0.0
    %37 = vst [vmem:[#allocation2 + $0x68] sm:$0xff] 0.0
    %38 = vst [vmem:[#allocation2 + $0x70] sm:$0xff] 0.0
    %39 = vst [vmem:[#allocation2 + $0x78] sm:$0xff] 0.0
    %40 = vst [vmem:[#allocation2 + $0x80] sm:$0xff] 0.0
    %41 = vst [vmem:[#allocation2 + $0x88] sm:$0xff] 0.0
    %42 = vst [vmem:[#allocation2 + $0x90] sm:$0xff] 0.0
    %43 = vst [vmem:[#allocation2 + $0x98] sm:$0xff] 0.0
  $region21: #{_lambda_.1} parent=0 // pred_fallthru
    _
  %v44 = vld [vmem:[%s0] sm:$0xf]
  %v45 = vunpack.c.l.bf16 %v44
  %v47 = vcombine.high %v45, %v45
  %49 = vst [vmem:[#allocation2] sm:$0xf] %v45
  %50 = vst [vmem:[#allocation2 + $0x8] sm:$0xf] %v47
  %v51 = vld [vmem:[%s0] sm:$0x3f]
  %v52 = vunpack.c.l.bf16 %v51
  %v53 = vunpack.c.h.bf16 %v51
  %v56 = vcombine.low %v52, %v52
  %v57 = vcombine.low %v53, %v53
  %58 = vrot.lane.b32.xlu0 %v56, 127
  %v59 = vpop.permute.xlu0 %58
  %60 = vrot.lane.b32.xlu0 %v52, 127
  %v61 = vpop.permute.xlu0 %60
  %62 = vrot.lane.b32.xlu0 %v57, 127
  %v63 = vpop.permute.xlu0 %62
  %vm64 = vcmask 1039360
  %v65 = vsel %vm64, %v59, %v61
  %v66 = vsel %vm64, %v61, %v63
  %69 = vst [vmem:[#allocation2] sm:$0xf0] %v65
  %70 = vst [vmem:[#allocation2 + $0x8] sm:$0xf0] %v66
  %v71 = vld [vmem:[%s0] sm:$0x3f]
  %v72 = vunpack.c.l.bf16 %v71
  %v73 = vunpack.c.h.bf16 %v71
  %v76 = vcombine.high %v72, %v72
  %77 = vrot.lane.b32.xlu0 %v72, 126
  %v78 = vpop.permute.xlu0 %77
  %79 = vrot.lane.b32.xlu0 %v76, 126
  %v80 = vpop.permute.xlu0 %79
  %81 = vrot.lane.b32.xlu0 %v73, 126
  %v82 = vpop.permute.xlu0 %81
  %vm83 = vcmask 1031168
  %v84 = vsel %vm83, %v78, %v80
  %v85 = vsel %vm83, %v80, %v82
  %88 = vst [vmem:[#allocation2 + $0x20] sm:$0xf] %v84
  %89 = vst [vmem:[#allocation2 + $0x28] sm:$0xf] %v85
  %v90 = vld [vmem:[%s0] sm:$0x3f]
  %v91 = vunpack.c.l.bf16 %v90
  %v92 = vunpack.c.h.bf16 %v90
  %v95 = vcombine.low %v91, %v91
  %v96 = vcombine.low %v92, %v92
  %97 = vrot.lane.b32.xlu0 %v95, 112
  %v98 = vpop.permute.xlu0 %97
  %99 = vrot.lane.b32.xlu0 %v91, 112
  %v100 = vpop.permute.xlu0 %99
  %101 = vrot.lane.b32.xlu0 %v96, 112
  %v102 = vpop.permute.xlu0 %101
  %vm103 = vcmask 916480
  %v104 = vsel %vm103, %v98, %v100
  %v105 = vsel %vm103, %v100, %v102
  %108 = vst [vmem:[#allocation2 + $0x20] sm:$0xf0] %v104
  %109 = vst [vmem:[#allocation2 + $0x28] sm:$0xf0] %v105
  %v110 = vld [vmem:[%s0] sm:$0x3f]
  %v111 = vunpack.c.l.bf16 %v110
  %v112 = vunpack.c.h.bf16 %v110
  %v115 = vcombine.high %v111, %v111
  %116 = vrot.lane.b32.xlu0 %v111, 111
  %v117 = vpop.permute.xlu0 %116
  %118 = vrot.lane.b32.xlu0 %v115, 111
  %v119 = vpop.permute.xlu0 %118
  %120 = vrot.lane.b32.xlu0 %v112, 111
  %v121 = vpop.permute.xlu0 %120
  %vm122 = vcmask 908288
  %v123 = vsel %vm122, %v117, %v119
  %v124 = vsel %vm122, %v119, %v121
  %127 = vst [vmem:[#allocation2 + $0x40] sm:$0xf] %v123
  %128 = vst [vmem:[#allocation2 + $0x48] sm:$0xf] %v124
  %v129 = vld [vmem:[%s0] sm:$0x3f]
  %v130 = vunpack.c.l.bf16 %v129
  %v131 = vunpack.c.h.bf16 %v129
  %v134 = vcombine.low %v130, %v130
  %v135 = vcombine.low %v131, %v131
  %136 = vrot.lane.b32.xlu0 %v134, 110
  %v137 = vpop.permute.xlu0 %136
  %138 = vrot.lane.b32.xlu0 %v130, 110
  %v139 = vpop.permute.xlu0 %138
  %140 = vrot.lane.b32.xlu0 %v135, 110
  %v141 = vpop.permute.xlu0 %140
  %vm142 = vcmask 900096
  %v143 = vsel %vm142, %v137, %v139
  %v144 = vsel %vm142, %v139, %v141
  %147 = vst [vmem:[#allocation2 + $0x40] sm:$0xf0] %v143
  %148 = vst [vmem:[#allocation2 + $0x48] sm:$0xf0] %v144
  %v149 = vld [vmem:[%s0] sm:$0x3f]
  %v150 = vunpack.c.l.bf16 %v149
  %v151 = vunpack.c.h.bf16 %v149
  %v154 = vcombine.high %v150, %v150
  %155 = vrot.lane.b32.xlu0 %v150, 96
  %v156 = vpop.permute.xlu0 %155
  %157 = vrot.lane.b32.xlu0 %v154, 96
  %v158 = vpop.permute.xlu0 %157
  %159 = vrot.lane.b32.xlu0 %v151, 96
  %v160 = vpop.permute.xlu0 %159
  %vm161 = vcmask 785408
  %v162 = vsel %vm161, %v156, %v158
  %v163 = vsel %vm161, %v158, %v160
  %166 = vst [vmem:[#allocation2 + $0x60] sm:$0xf] %v162
  %167 = vst [vmem:[#allocation2 + $0x68] sm:$0xf] %v163
  %v168 = vld [vmem:[%s0] sm:$0x3f]
  %v169 = vunpack.c.l.bf16 %v168
  %v170 = vunpack.c.h.bf16 %v168
  %v173 = vcombine.low %v169, %v169
  %v174 = vcombine.low %v170, %v170
  %175 = vrot.lane.b32.xlu0 %v173, 95
  %v176 = vpop.permute.xlu0 %175
  %177 = vrot.lane.b32.xlu0 %v169, 95
  %v178 = vpop.permute.xlu0 %177
  %179 = vrot.lane.b32.xlu0 %v174, 95
  %v180 = vpop.permute.xlu0 %179
  %vm181 = vcmask 777216
  %v182 = vsel %vm181, %v176, %v178
  %v183 = vsel %vm181, %v178, %v180
  %186 = vst [vmem:[#allocation2 + $0x60] sm:$0xf0] %v182
  %187 = vst [vmem:[#allocation2 + $0x68] sm:$0xf0] %v183
  %v188 = vld [vmem:[%s0] sm:$0x3f]
  %v189 = vunpack.c.l.bf16 %v188
  %v190 = vunpack.c.h.bf16 %v188
  %v193 = vcombine.high %v189, %v189
  %194 = vrot.lane.b32.xlu0 %v189, 94
  %v195 = vpop.permute.xlu0 %194
  %196 = vrot.lane.b32.xlu0 %v193, 94
  %v197 = vpop.permute.xlu0 %196
  %198 = vrot.lane.b32.xlu0 %v190, 94
  %v199 = vpop.permute.xlu0 %198
  %vm200 = vcmask 769024
  %v201 = vsel %vm200, %v195, %v197
  %v202 = vsel %vm200, %v197, %v199
  %205 = vst [vmem:[#allocation2 + $0x80] sm:$0xf] %v201
  %206 = vst [vmem:[#allocation2 + $0x88] sm:$0xf] %v202
  %s207 = scalar_lea.vmem %s0, 6
  %v208 = vld [vmem:[%s207] sm:$0xf]
  %v209 = vunpack.c.l.bf16 %v208
  %v211 = vcombine.high %v209, %v209
  %213 = vst [vmem:[#allocation2 + $0x10] sm:$0xf] %v209
  %214 = vst [vmem:[#allocation2 + $0x18] sm:$0xf] %v211
  %v215 = vld [vmem:[%s207] sm:$0x3f]
  %v216 = vunpack.c.l.bf16 %v215
  %v217 = vunpack.c.h.bf16 %v215
  %v220 = vcombine.low %v216, %v216
  %v221 = vcombine.low %v217, %v217
  %222 = vrot.lane.b32.xlu0 %v220, 127
  %v223 = vpop.permute.xlu0 %222
  %224 = vrot.lane.b32.xlu0 %v216, 127
  %v225 = vpop.permute.xlu0 %224
  %226 = vrot.lane.b32.xlu0 %v221, 127
  %v227 = vpop.permute.xlu0 %226
  %v228 = vsel %vm64, %v223, %v225
  %v229 = vsel %vm64, %v225, %v227
  %232 = vst [vmem:[#allocation2 + $0x10] sm:$0xf0] %v228
  %233 = vst [vmem:[#allocation2 + $0x18] sm:$0xf0] %v229
  %v234 = vld [vmem:[%s207] sm:$0x3f]
  %v235 = vunpack.c.l.bf16 %v234
  %v236 = vunpack.c.h.bf16 %v234
  %v239 = vcombine.high %v235, %v235
  %240 = vrot.lane.b32.xlu0 %v235, 126
  %v241 = vpop.permute.xlu0 %240
  %242 = vrot.lane.b32.xlu0 %v239, 126
  %v243 = vpop.permute.xlu0 %242
  %244 = vrot.lane.b32.xlu0 %v236, 126
  %v245 = vpop.permute.xlu0 %244
  %v246 = vsel %vm83, %v241, %v243
  %v247 = vsel %vm83, %v243, %v245
  %250 = vst [vmem:[#allocation2 + $0x30] sm:$0xf] %v246
  %251 = vst [vmem:[#allocation2 + $0x38] sm:$0xf] %v247
  %v252 = vld [vmem:[%s207] sm:$0x3f]
  %v253 = vunpack.c.l.bf16 %v252
  %v254 = vunpack.c.h.bf16 %v252
  %v257 = vcombine.low %v253, %v253
  %v258 = vcombine.low %v254, %v254
  %259 = vrot.lane.b32.xlu0 %v257, 112
  %v260 = vpop.permute.xlu0 %259
  %261 = vrot.lane.b32.xlu0 %v253, 112
  %v262 = vpop.permute.xlu0 %261
  %263 = vrot.lane.b32.xlu0 %v258, 112
  %v264 = vpop.permute.xlu0 %263
  %v265 = vsel %vm103, %v260, %v262
  %v266 = vsel %vm103, %v262, %v264
  %269 = vst [vmem:[#allocation2 + $0x30] sm:$0xf0] %v265
  %270 = vst [vmem:[#allocation2 + $0x38] sm:$0xf0] %v266
  %v271 = vld [vmem:[%s207] sm:$0x3f]
  %v272 = vunpack.c.l.bf16 %v271
  %v273 = vunpack.c.h.bf16 %v271
  %v276 = vcombine.high %v272, %v272
  %277 = vrot.lane.b32.xlu0 %v272, 111
  %v278 = vpop.permute.xlu0 %277
  %279 = vrot.lane.b32.xlu0 %v276, 111
  %v280 = vpop.permute.xlu0 %279
  %281 = vrot.lane.b32.xlu0 %v273, 111
  %v282 = vpop.permute.xlu0 %281
  %v283 = vsel %vm122, %v278, %v280
  %v284 = vsel %vm122, %v280, %v282
  %287 = vst [vmem:[#allocation2 + $0x50] sm:$0xf] %v283
  %288 = vst [vmem:[#allocation2 + $0x58] sm:$0xf] %v284
  %v289 = vld [vmem:[%s207] sm:$0x3f]
  %v290 = vunpack.c.l.bf16 %v289
  %v291 = vunpack.c.h.bf16 %v289
  %v294 = vcombine.low %v290, %v290
  %v295 = vcombine.low %v291, %v291
  %296 = vrot.lane.b32.xlu0 %v294, 110
  %v297 = vpop.permute.xlu0 %296
  %298 = vrot.lane.b32.xlu0 %v290, 110
  %v299 = vpop.permute.xlu0 %298
  %300 = vrot.lane.b32.xlu0 %v295, 110
  %v301 = vpop.permute.xlu0 %300
  %v302 = vsel %vm142, %v297, %v299
  %v303 = vsel %vm142, %v299, %v301
  %306 = vst [vmem:[#allocation2 + $0x50] sm:$0xf0] %v302
  %307 = vst [vmem:[#allocation2 + $0x58] sm:$0xf0] %v303
  %v308 = vld [vmem:[%s207] sm:$0x3f]
  %v309 = vunpack.c.l.bf16 %v308
  %v310 = vunpack.c.h.bf16 %v308
  %v313 = vcombine.high %v309, %v309
  %314 = vrot.lane.b32.xlu0 %v309, 96
  %v315 = vpop.permute.xlu0 %314
  %316 = vrot.lane.b32.xlu0 %v313, 96
  %v317 = vpop.permute.xlu0 %316
  %318 = vrot.lane.b32.xlu0 %v310, 96
  %v319 = vpop.permute.xlu0 %318
  %v320 = vsel %vm161, %v315, %v317
  %v321 = vsel %vm161, %v317, %v319
  %324 = vst [vmem:[#allocation2 + $0x70] sm:$0xf] %v320
  %325 = vst [vmem:[#allocation2 + $0x78] sm:$0xf] %v321
  %v326 = vld [vmem:[%s207] sm:$0x3f]
  %v327 = vunpack.c.l.bf16 %v326
  %v328 = vunpack.c.h.bf16 %v326
  %v331 = vcombine.low %v327, %v327
  %v332 = vcombine.low %v328, %v328
  %333 = vrot.lane.b32.xlu0 %v331, 95
  %v334 = vpop.permute.xlu0 %333
  %335 = vrot.lane.b32.xlu0 %v327, 95
  %v336 = vpop.permute.xlu0 %335
  %337 = vrot.lane.b32.xlu0 %v332, 95
  %v338 = vpop.permute.xlu0 %337
  %v339 = vsel %vm181, %v334, %v336
  %v340 = vsel %vm181, %v336, %v338
  %343 = vst [vmem:[#allocation2 + $0x70] sm:$0xf0] %v339
  %344 = vst [vmem:[#allocation2 + $0x78] sm:$0xf0] %v340
  %v345 = vld [vmem:[%s207] sm:$0x3f]
  %v346 = vunpack.c.l.bf16 %v345
  %v347 = vunpack.c.h.bf16 %v345
  %v350 = vcombine.high %v346, %v346
  %351 = vrot.lane.b32.xlu0 %v346, 94
  %v352 = vpop.permute.xlu0 %351
  %353 = vrot.lane.b32.xlu0 %v350, 94
  %v354 = vpop.permute.xlu0 %353
  %355 = vrot.lane.b32.xlu0 %v347, 94
  %v356 = vpop.permute.xlu0 %355
  %v357 = vsel %vm200, %v352, %v354
  %v358 = vsel %vm200, %v354, %v356
  %361 = vst [vmem:[#allocation2 + $0x90] sm:$0xf] %v357
  %362 = vst [vmem:[#allocation2 + $0x98] sm:$0xf] %v358
  %v363 = vld [vmem:[%s1] sm:$0xff]
  %v364 = vld [vmem:[#allocation2] sm:$0xff]
  %v365 = vld [vmem:[#allocation2 + $0x8] sm:$0xff]
  %v366 = vld [vmem:[#allocation2 + $0x10] sm:$0xff]
  %v367 = vld [vmem:[#allocation2 + $0x18] sm:$0xff]
  %v368 = vld [vmem:[#allocation2 + $0x20] sm:$0xff]
  %v369 = vld [vmem:[#allocation2 + $0x28] sm:$0xff]
  %v370 = vld [vmem:[#allocation2 + $0x30] sm:$0xff]
  %v371 = vld [vmem:[#allocation2 + $0x38] sm:$0xff]
  %v372 = vld [vmem:[#allocation2 + $0x40] sm:$0xff]
  %v373 = vld [vmem:[#allocation2 + $0x48] sm:$0xff]
  %v374 = vld [vmem:[#allocation2 + $0x50] sm:$0xff]
  %v375 = vld [vmem:[#allocation2 + $0x58] sm:$0xff]
  %v376 = vld [vmem:[#allocation2 + $0x60] sm:$0xff]
  %v377 = vld [vmem:[#allocation2 + $0x68] sm:$0xff]
  %v378 = vld [vmem:[#allocation2 + $0x70] sm:$0xff]
  %v379 = vld [vmem:[#allocation2 + $0x78] sm:$0xff]
  %v380 = vld [vmem:[#allocation2 + $0x80] sm:$0xff]
  %v381 = vld [vmem:[#allocation2 + $0x88] sm:$0xff]
  %v382 = vld [vmem:[#allocation2 + $0x90] sm:$0xff]
  %v383 = vld [vmem:[#allocation2 + $0x98] sm:$0xff]
  %vm384 = vcmask 326656
  %v386 = vsel %vm384, %v363, 0
  %388 = vmatprep.subr.mxu0 %v365
  %389 = vmatpush1.msra.mxu0 %v364
  %390 = vmatprep.subr.mxu0 %v369
  %391 = vmatpush1.msra.mxu0 %v368
  %392 = vmatprep.subr.mxu0 %v373
  %393 = vmatpush1.msra.mxu0 %v372
  %394 = vmatprep.subr.mxu0 %v377
  %395 = vmatpush1.msra.mxu0 %v376
  %396 = vmatprep.subr.mxu0 %v381
  %397 = vmatpush1.msra.mxu0 %v380
  %398 = vmatprep.subr.mxu0 0.0
  %399 = vmatpush1.msra.mxu0 0.0
  %400 = vmatprep.subr.mxu0 0.0
  %401 = vmatpush1.msra.mxu0 0.0
  %402 = vmatprep.subr.mxu0 0.0
  %403 = vmatpush1.msra.mxu0 0.0
  %404 = vmatprep.subr.mxu0 0.0
  %405 = vmatpush1.msra.mxu0 0.0
  %406 = vmatprep.subr.mxu0 0.0
  %407 = vmatpush1.msra.mxu0 0.0
  %408 = vmatprep.subr.mxu0 0.0
  %409 = vmatpush1.msra.mxu0 0.0
  %410 = vmatprep.subr.mxu0 0.0
  %411 = vmatpush1.msra.mxu0 0.0
  %412 = vmatprep.subr.mxu0 0.0
  %413 = vmatpush1.msra.mxu0 0.0
  %414 = vmatprep.subr.mxu0 0.0
  %415 = vmatpush1.msra.mxu0 0.0
  %416 = vmatprep.subr.mxu0 0.0
  %417 = vmatpush1.msra.mxu0 0.0
  %418 = vmatprep.subr.mxu0 0.0
  %419 = vmatpush1.msra.mxu0 0.0
  %420 = vmatprep.subr.mxu0 0.0
  %421 = vmatpush1.msra.mxu0 0.0
  %422 = vmatprep.subr.mxu0 0.0
  %423 = vmatpush1.msra.mxu0 0.0
  %424 = vmatprep.subr.mxu0 0.0
  %425 = vmatpush1.msra.mxu0 0.0
  %426 = vmatprep.subr.mxu0 0.0
  %427 = vmatpush1.msra.mxu0 0.0
  %428 = vmatprep.subr.mxu0 0.0
  %429 = vmatpush1.msra.mxu0 0.0
  %430 = vmatprep.subr.mxu0 0.0
  %431 = vmatpush1.msra.mxu0 0.0
  %432 = vmatprep.subr.mxu0 0.0
  %433 = vmatpush1.msra.mxu0 0.0
  %434 = vmatprep.subr.mxu0 0.0
  %435 = vmatpush1.msra.mxu0 0.0
  %436 = vmatprep.subr.mxu0 0.0
  %437 = vmatpush1.msra.mxu0 0.0
  %438 = vmatprep.subr.mxu0 0.0
  %439 = vmatpush1.msra.mxu0 0.0
  %440 = vmatprep.subr.mxu0 0.0
  %441 = vmatpush1.msra.mxu0 0.0
  %442 = vmatprep.subr.mxu0 0.0
  %443 = vmatpush1.msra.mxu0 0.0
  %444 = vmatprep.subr.mxu0 0.0
  %445 = vmatpush1.msra.mxu0 0.0
  %446 = vmatprep.subr.mxu0 0.0
  %447 = vmatpush1.msra.mxu0 0.0
  %448 = vmatprep.subr.mxu0 0.0
  %449 = vmatpush1.msra.mxu0 0.0
  %450 = vmatprep.subr.mxu0 0.0
  %451 = vmatpush1.msra.mxu0 0.0
  %452 = vmatprep.mubr.f32.mxu0 0.0
  %453 = vmatmul.mubr.f32.gmra.mrb[0].mxu0 %v386
  %v454 = vpop.f32.mrb[0].mxu0
  %v455 = vadd.f32 0.0, %v454
  %v456 = vpop.f32.mrb[0].mxu0
  %v457 = vadd.f32 0.0, %v456
  %458 = vdwg.mxu0
  %459 = vmatprep.subr.mxu0 %v367
  %460 = vmatpush1.msra.mxu0 %v366
  %461 = vmatprep.subr.mxu0 %v371
  %462 = vmatpush1.msra.mxu0 %v370
  %463 = vmatprep.subr.mxu0 %v375
  %464 = vmatpush1.msra.mxu0 %v374
  %465 = vmatprep.subr.mxu0 %v379
  %466 = vmatpush1.msra.mxu0 %v378
  %467 = vmatprep.subr.mxu0 %v383
  %468 = vmatpush1.msra.mxu0 %v382
  %469 = vmatprep.subr.mxu0 0.0
  %470 = vmatpush1.msra.mxu0 0.0
  %471 = vmatprep.subr.mxu0 0.0
  %472 = vmatpush1.msra.mxu0 0.0
  %473 = vmatprep.subr.mxu0 0.0
  %474 = vmatpush1.msra.mxu0 0.0
  %475 = vmatprep.subr.mxu0 0.0
  %476 = vmatpush1.msra.mxu0 0.0
  %477 = vmatprep.subr.mxu0 0.0
  %478 = vmatpush1.msra.mxu0 0.0
  %479 = vmatprep.subr.mxu0 0.0
  %480 = vmatpush1.msra.mxu0 0.0
  %481 = vmatprep.subr.mxu0 0.0
  %482 = vmatpush1.msra.mxu0 0.0
  %483 = vmatprep.subr.mxu0 0.0
  %484 = vmatpush1.msra.mxu0 0.0
  %485 = vmatprep.subr.mxu0 0.0
  %486 = vmatpush1.msra.mxu0 0.0
  %487 = vmatprep.subr.mxu0 0.0
  %488 = vmatpush1.msra.mxu0 0.0
  %489 = vmatprep.subr.mxu0 0.0
  %490 = vmatpush1.msra.mxu0 0.0
  %491 = vmatprep.subr.mxu0 0.0
  %492 = vmatpush1.msra.mxu0 0.0
  %493 = vmatprep.subr.mxu0 0.0
  %494 = vmatpush1.msra.mxu0 0.0
  %495 = vmatprep.subr.mxu0 0.0
  %496 = vmatpush1.msra.mxu0 0.0
  %497 = vmatprep.subr.mxu0 0.0
  %498 = vmatpush1.msra.mxu0 0.0
  %499 = vmatprep.subr.mxu0 0.0
  %500 = vmatpush1.msra.mxu0 0.0
  %501 = vmatprep.subr.mxu0 0.0
  %502 = vmatpush1.msra.mxu0 0.0
  %503 = vmatprep.subr.mxu0 0.0
  %504 = vmatpush1.msra.mxu0 0.0
  %505 = vmatprep.subr.mxu0 0.0
  %506 = vmatpush1.msra.mxu0 0.0
  %507 = vmatprep.subr.mxu0 0.0
  %508 = vmatpush1.msra.mxu0 0.0
  %509 = vmatprep.subr.mxu0 0.0
  %510 = vmatpush1.msra.mxu0 0.0
  %511 = vmatprep.subr.mxu0 0.0
  %512 = vmatpush1.msra.mxu0 0.0
  %513 = vmatprep.subr.mxu0 0.0
  %514 = vmatpush1.msra.mxu0 0.0
  %515 = vmatprep.subr.mxu0 0.0
  %516 = vmatpush1.msra.mxu0 0.0
  %517 = vmatprep.subr.mxu0 0.0
  %518 = vmatpush1.msra.mxu0 0.0
  %519 = vmatprep.subr.mxu0 0.0
  %520 = vmatpush1.msra.mxu0 0.0
  %521 = vmatprep.subr.mxu0 0.0
  %522 = vmatpush1.msra.mxu0 0.0
  %523 = vmatprep.mubr.f32.mxu0 0.0
  %524 = vmatmul.mubr.f32.gmra.mrb[0].mxu0 %v386
  %v525 = vpop.f32.mrb[0].mxu0
  %v526 = vadd.f32 0.0, %v525
  %v527 = vpop.f32.mrb[0].mxu0
  %v528 = vadd.f32 0.0, %v527
  %529 = vdwg.mxu0
  %v530 = vld [vmem:[%s3] sm:$0xf]
  %v532 = vlaneseq
  %v533 = vshrl.u32 %v532, 7
  %v534 = vsub.s32 0, %v533
  %v535 = vrot.slane %v530, %v534
  %v536 = vlaneseq
  %v537 = vshrl.u32 %v536, 7
  %v538 = vsub.s32 1, %v537
  %v539 = vrot.slane %v530, %v538
  %v540 = vlaneseq
  %v541 = vshrl.u32 %v540, 7
  %v542 = vsub.s32 2, %v541
  %v543 = vrot.slane %v530, %v542
  %v544 = vlaneseq
  %v545 = vshrl.u32 %v544, 7
  %v546 = vsub.s32 3, %v545
  %v547 = vrot.slane %v530, %v546
  %v552 = vmul.f32 %v455, %v535
  %v553 = vmul.f32 %v457, %v539
  %v554 = vmul.f32 %v526, %v543
  %v555 = vmul.f32 %v528, %v547
  %v556 = vld [vmem:[#allocation4] sm:$0xff]
  %v557 = vadd.f32 %v552, %v553
  %v558 = vadd.f32 %v557, %v554
  %v559 = vadd.f32 %v558, %v555
  %560 = vadd.xlane.f32.xlu0 %v559
  %v561 = vpop.xlane.xlu0 %560
  %v562 = vadd.f32 %v556, %v561
  %vm563 = vcmask 7168
  %564 = vst.msk [vmem:[#allocation4] sm:$0xff] %vm563, %v562
  %v565 = vld [vmem:[#allocation5] sm:$0xff]
  %v566 = vmul.f32 %v552, %v455
  %v567 = vmul.f32 %v553, %v457
  %v568 = vmul.f32 %v554, %v526
  %v569 = vmul.f32 %v555, %v528
  %v570 = vadd.f32 %v566, %v567
  %v571 = vadd.f32 %v570, %v568
  %v572 = vadd.f32 %v571, %v569
  %573 = vadd.xlane.f32.xlu0 %v572
  %v574 = vpop.xlane.xlu0 %573
  %v575 = vadd.f32 %v565, %v574
  %576 = vst.msk [vmem:[#allocation5] sm:$0xff] %vm563, %v575
  // Predicated region
  $region22: #{_lambda_.1} parent=0 // pred_check
    %p577 = pneg %p17
  $region23: #{_lambda_.1} parent=0 // pred_check_branch
    %579 = sbr.rel (%p577) target = $region25
  $region24: #{_lambda_.1} parent=0 // pred_region
    %v580 = vld [vmem:[#allocation4] sm:$0xff]
    %v581 = vmul.f32 %v580, 0.0025510204
    %v582 = vld [vmem:[#allocation5] sm:$0xff]
    %v583 = vmul.f32 %v582, 0.0025510204
    %v584 = vmul.f32 %v581, %v581
    %v585 = vsub.f32 %v583, %v584
    %v586 = vmax.f32 %v585, 0.0
    %v587 = vld [vmem:[%s2] sm:$0xff]
    %v588 = vadd.f32 %v586, 1e-05
    %v589 = vrsqrt.pop %v588
    %v590 = vmul.f32 %v587, %v589
    %v591 = vmul.f32 %v581, %v590
    %593 = vrot.lane.b32.xlu0 %v591, 1
    %v594 = vpop.permute.xlu0 %593
    %v596 = vsub.f32 %v587, %v594
    %598 = vset.pattern.permute.xlu0 0
    %599 = vperm.xlu0 %598, %v590
    %v600 = vpop.permute.xlu0 %599
    %v602 = vmul.f32 %v455, %v600
    %v603 = vmul.f32 %v457, %v600
    %v604 = vmul.f32 %v526, %v600
    %v605 = vmul.f32 %v528, %v600
    %607 = vset.pattern.permute.xlu0 1
    %608 = vperm.xlu0 %607, %v596
    %v609 = vpop.permute.xlu0 %608
    %v611 = vadd.f32 %v602, %v609
    %v612 = vadd.f32 %v603, %v609
    %v613 = vadd.f32 %v604, %v609
    %v614 = vadd.f32 %v605, %v609
    %v615 = vmul.f32 %v611, 0.5
    %v616 = vmul.f32 %v612, 0.5
    %v617 = vmul.f32 %v613, 0.5
    %v618 = vmul.f32 %v614, 0.5
    %v619 = vmul.f32 %v611, 0.70710677
    %v620 = vmul.f32 %v612, 0.70710677
    %v621 = vmul.f32 %v613, 0.70710677
    %v622 = vmul.f32 %v614, 0.70710677
    %vm623 = vcmp.ge.f32.partialorder %v619, 0.0
    %vm624 = vcmp.ge.f32.partialorder %v620, 0.0
    %vm625 = vcmp.ge.f32.partialorder %v621, 0.0
    %vm626 = vcmp.ge.f32.partialorder %v622, 0.0
    %v627 = vsel %vm623, 1.0, -1.0
    %v628 = vsel %vm624, 1.0, -1.0
    %v629 = vsel %vm625, 1.0, -1.0
    %v630 = vsel %vm626, 1.0, -1.0
    %v631 = vand.u32 2147483647, %v619
    %v632 = vand.u32 2147483647, %v620
    %v633 = vand.u32 2147483647, %v621
    %v634 = vand.u32 2147483647, %v622
    %v635 = vmul.f32 %v631, 0.3275911
    %v636 = vmul.f32 %v632, 0.3275911
    %v637 = vmul.f32 %v633, 0.3275911
    %v638 = vmul.f32 %v634, 0.3275911
    %v639 = vadd.f32 %v635, 1.0
    %v640 = vadd.f32 %v636, 1.0
    %v641 = vadd.f32 %v637, 1.0
    %v642 = vadd.f32 %v638, 1.0
    %v643 = vrcp.pop %v639
    %v644 = vrcp.pop %v640
    %v645 = vrcp.pop %v641
    %v646 = vrcp.pop %v642
    %v647 = vmul.f32 %v643, 1.0614054
    %v648 = vmul.f32 %v644, 1.0614054
    %v649 = vmul.f32 %v645, 1.0614054
    %v650 = vmul.f32 %v646, 1.0614054
    %v651 = vadd.f32 %v647, -1.4531521
    %v652 = vadd.f32 %v648, -1.4531521
    %v653 = vadd.f32 %v649, -1.4531521
    %v654 = vadd.f32 %v650, -1.4531521
    %v655 = vmul.f32 %v651, %v643
    %v656 = vmul.f32 %v652, %v644
    %v657 = vmul.f32 %v653, %v645
    %v658 = vmul.f32 %v654, %v646
    %v659 = vadd.f32 %v655, 1.4214138
    %v660 = vadd.f32 %v656, 1.4214138
    %v661 = vadd.f32 %v657, 1.4214138
    %v662 = vadd.f32 %v658, 1.4214138
    %v663 = vmul.f32 %v659, %v643
    %v664 = vmul.f32 %v660, %v644
    %v665 = vmul.f32 %v661, %v645
    %v666 = vmul.f32 %v662, %v646
    %v667 = vadd.f32 %v663, -0.28449672
    %v668 = vadd.f32 %v664, -0.28449672
    %v669 = vadd.f32 %v665, -0.28449672
    %v670 = vadd.f32 %v666, -0.28449672
    %v671 = vmul.f32 %v667, %v643
    %v672 = vmul.f32 %v668, %v644
    %v673 = vmul.f32 %v669, %v645
    %v674 = vmul.f32 %v670, %v646
    %v675 = vadd.f32 %v671, 0.2548296
    %v676 = vadd.f32 %v672, 0.2548296
    %v677 = vadd.f32 %v673, 0.2548296
    %v678 = vadd.f32 %v674, 0.2548296
    %v679 = vmul.f32 %v675, %v643
    %v680 = vmul.f32 %v676, %v644
    %v681 = vmul.f32 %v677, %v645
    %v682 = vmul.f32 %v678, %v646
    %v683 = vsub.f32 0.0, %v631
    %v684 = vsub.f32 0.0, %v632
    %v685 = vsub.f32 0.0, %v633
    %v686 = vsub.f32 0.0, %v634
    %v687 = vmul.f32 %v683, %v631
    %v688 = vmul.f32 %v684, %v632
    %v689 = vmul.f32 %v685, %v633
    %v690 = vmul.f32 %v686, %v634
    %v691 = vmul.f32 %v687, 1.442695
    %v692 = vpow.pop %v691
    %v693 = vmul.f32 %v688, 1.442695
    %v694 = vpow.pop %v693
    %v695 = vmul.f32 %v689, 1.442695
    %v696 = vpow.pop %v695
    %v697 = vmul.f32 %v690, 1.442695
    %v698 = vpow.pop %v697
    %v699 = vmul.f32 %v679, %v692
    %v700 = vmul.f32 %v680, %v694
    %v701 = vmul.f32 %v681, %v696
    %v702 = vmul.f32 %v682, %v698
    %v703 = vsub.f32 1.0, %v699
    %v704 = vsub.f32 1.0, %v700
    %v705 = vsub.f32 1.0, %v701
    %v706 = vsub.f32 1.0, %v702
    %v707 = vmul.f32 %v627, %v703
    %v708 = vmul.f32 %v628, %v704
    %v709 = vmul.f32 %v629, %v705
    %v710 = vmul.f32 %v630, %v706
    %v711 = vadd.f32 %v707, 1.0
    %v712 = vadd.f32 %v708, 1.0
    %v713 = vadd.f32 %v709, 1.0
    %v714 = vadd.f32 %v710, 1.0
    %v715 = vmul.f32 %v615, %v711
    %v716 = vmul.f32 %v616, %v712
    %v717 = vmul.f32 %v617, %v713
    %v718 = vmul.f32 %v618, %v714
    %719 = vst [vmem:[%s4] sm:$0xff] %v715
    %720 = vst [vmem:[%s4 + $0x8] sm:$0xff] %v716
    %s721 = scalar_lea.vmem %s4, 16
    %722 = vst [vmem:[%s721] sm:$0xff] %v717
    %723 = vst [vmem:[%s721 + $0x8] sm:$0xff] %v718
  $region25: #{_lambda_.1} parent=0 // pred_fallthru
    _
  // Predicated region
  $region26: #{_lambda_.1} parent=0 // pred_check
    _
  $region27: #{_lambda_.1} parent=0 // pred_check_branch
    %725 = sbr.rel (0) target = $region29
  $region28: #{_lambda_.1} parent=0 // pred_region
    _
  $region29: #{_lambda_.1} parent=0 // pred_fallthru
    _
  // Predicated region
  $region30: #{_lambda_.1} parent=0 // pred_check
    _
  $region31: #{_lambda_.1} parent=0 // pred_check_branch
    %727 = sbr.rel (0) target = $region33
  $region32: #{_lambda_.1} parent=0 // pred_region
    _
  $region33: #{_lambda_.1} parent=0 // pred_fallthru
    _

</llo_original>
